<compile_context>
chip_gen: v7x
topology: tpu7x:2x2x1
jax: 0.10.0
libtpu: 0.0.40
codegen_flags: <defaults>
</compile_context>

<pallas_src>
import jax
import jax.numpy as jnp
from jax import lax
from jax.experimental import pallas as pl
from jax.experimental.pallas import tpu as pltpu

VOCAB = 10          # real vocab size (nn.Embedding(10, 10))
DIM = 10            # real hidden size (outputs are stored un-padded at this width)
VOCAB_PAD = 16      # contraction width, padded to a sublane multiple of 8
TILE_N = 2048       # token rows per grid step (multiple of 8)


def _round_up(x, m):
    return ((x + m - 1) // m) * m


def fused_lookup_kernel(ids_ref, table_ref, out_ref):
    # ids_ref   : (tile_n, 1)          int32 token ids
    # table_ref : (VOCAB_PAD, DIM)     f32 fused (emb->linear->lm_head) table
    # out_ref   : (tile_n, DIM)        f32  (narrow, un-padded output columns)
    tile_n = ids_ref.shape[0]
    # One-hot gather expressed as a single small MXU matmul (K=16, N=10).
    vocab_iota = lax.broadcasted_iota(jnp.int32, (tile_n, VOCAB_PAD), 1)
    onehot = (ids_ref[...] == vocab_iota).astype(jnp.float32)
    out_ref[...] = jnp.dot(onehot, table_ref[...],
                           preferred_element_type=jnp.float32)


def _choose_tiling(n):
    """Pick (tile_n, n_pad) with tile_n a multiple of 8 and an even grid when >1 tile."""
    if n <= TILE_N:
        tile_n = _round_up(max(n, 8), 8)
        return tile_n, tile_n                      # single tile
    num_tiles = -(-n // TILE_N)                    # ceil
    if num_tiles % 2:                              # keep grid even for v7x's 2 TCs
        num_tiles += 1
    tile_n = _round_up(-(-n // num_tiles), 8)
    return tile_n, tile_n * num_tiles


def dummy_model_forward(input_ids, params):
    """input_ids: (B, S) int -> (B, S, DIM) float32 (matches the torch module)."""
    emb, w1, b1, w2, b2 = (
        params["embedding"],
        params["linear_w"],
        params["linear_b"],
        params["lm_head_w"],
        params["lm_head_b"],
    )
    # One-time fusion of the two linear layers into the embedding table
    # (10x10 matmuls in XLA -- negligible).
    fused = emb.astype(jnp.float32) @ w1.T.astype(jnp.float32) + b1.astype(jnp.float32)
    fused = fused @ w2.T.astype(jnp.float32) + b2.astype(jnp.float32)     # (VOCAB, DIM)
    table = jnp.zeros((VOCAB_PAD, DIM), jnp.float32).at[:VOCAB, :].set(fused)

    B, S = input_ids.shape
    n = B * S
    tile_n, n_pad = _choose_tiling(n)
    ids = jnp.zeros((n_pad, 1), jnp.int32).at[:n, 0].set(
        input_ids.reshape(-1).astype(jnp.int32))

    grid = (n_pad // tile_n,)

    out_padded = pl.pallas_call(
        fused_lookup_kernel,
        out_shape=jax.ShapeDtypeStruct((n_pad, DIM), jnp.float32),
        grid=grid,
        in_specs=[
            # Token ids stream in per tile.
            pl.BlockSpec((tile_n, 1), lambda i: (i, 0)),
            # Fused table (16x10, ~0.6 KiB) stays resident across all grid steps.
            pl.BlockSpec((VOCAB_PAD, DIM), lambda i: (0, 0)),
        ],
        out_specs=pl.BlockSpec((tile_n, DIM), lambda i: (i, 0)),
        compiler_params=pltpu.CompilerParams(
            dimension_semantics=("parallel",),
        ),
        cost_estimate=pl.CostEstimate(
            flops=2 * n_pad * VOCAB_PAD * DIM,
            transcendentals=0,
            bytes_accessed=(n_pad * 4                    # ids
                            + VOCAB_PAD * DIM * 4        # table
                            + n_pad * DIM * 4),          # output
        ),
    )(ids, table)

    out = out_padded if n_pad == n else out_padded[:n]
    return out.reshape(B, S, DIM)


def init_params(key):
    k_emb, k_w1, k_b1, k_w2, k_b2 = jax.random.split(key, 5)
    emb = jax.random.normal(k_emb, (VOCAB, DIM), jnp.float32)              # Embedding(10,10)
    bound = 1.0 / jnp.sqrt(DIM)
    w1 = jax.random.uniform(k_w1, (DIM, DIM), jnp.float32, -bound, bound)  # Linear(10,10).weight
    b1 = jax.random.uniform(k_b1, (DIM,), jnp.float32, -bound, bound)
    w2 = jax.random.uniform(k_w2, (DIM, DIM), jnp.float32, -bound, bound)  # Linear(10,10).weight
    b2 = jax.random.uniform(k_b2, (DIM,), jnp.float32, -bound, bound)
    return {
        "embedding": emb,
        "linear_w": w1,
        "linear_b": b1,
        "lm_head_w": w2,
        "lm_head_b": b2,
    }


if __name__ == "__main__":
    key = jax.random.PRNGKey(0)
    params = init_params(key)

    B, S = 2, 8
    input_ids = jax.random.randint(jax.random.PRNGKey(1), (B, S), 0, VOCAB, jnp.int32)

    out = dummy_model_forward(input_ids, params)
    out = jax.block_until_ready(out)

    # Pure-JAX reference (same op order as the PyTorch module).
    ref = params["embedding"][input_ids]
    ref = ref @ params["linear_w"].T + params["linear_b"]
    ref = ref @ params["lm_head_w"].T + params["lm_head_b"]

    assert out.shape == (B, S, DIM)
    assert jnp.allclose(out, ref, atol=1e-5), "mismatch vs JAX reference"

    print("KERNEL_OK")
</pallas_src>

<mosaic_0001>
module attributes {stable_mosaic.version = 11 : i64} {
  func.func @fused_lookup_kernel(%arg0: i32, %arg1: memref<16x1xi32, #tpu.memory_space<vmem>>, %arg2: memref<16x10xf32, #tpu.memory_space<vmem>>, %arg3: memref<16x10xf32, #tpu.memory_space<vmem>>) attributes {dimension_semantics = [#tpu.dimension_semantics<parallel>], iteration_bounds = array<i64: 1>, scalar_prefetch = 0 : i64, scratch_operands = 0 : i64, tpu.core_type = #tpu.core_type<tc>, window_params = [{transform_indices = @transform_0, window_bounds = array<i64: 16, 1>}, {pipeline_mode = #tpu.pipeline_mode<synchronous>, transform_indices = @transform_1, window_bounds = array<i64: 16, 10>}, {transform_indices = @transform_2, window_bounds = array<i64: 16, 10>}]} {
    %0 = tpu.iota {dimensions = array<i32: 1>} : vector<16x16xi32>
    %c0 = arith.constant 0 : index
    %c0_0 = arith.constant 0 : index
    %1 = vector.load %arg1[%c0, %c0_0] : memref<16x1xi32, #tpu.memory_space<vmem>>, vector<16x1xi32>
    %2 = vector.broadcast %1 : vector<16x1xi32> to vector<16x16xi32>
    %3 = arith.cmpi eq, %2, %0 : vector<16x16xi32>
    %4 = arith.extui %3 : vector<16x16xi1> to vector<16x16xi32>
    %5 = arith.sitofp %4 : vector<16x16xi32> to vector<16x16xf32>
    %c0_1 = arith.constant 0 : index
    %c0_2 = arith.constant 0 : index
    %6 = vector.load %arg2[%c0_1, %c0_2] : memref<16x10xf32, #tpu.memory_space<vmem>>, vector<16x10xf32>
    %cst = arith.constant dense<0.000000e+00> : vector<16x10xf32>
    %7 = tpu.matmul %5, %6, %cst {dimension_numbers = #tpu.dot_dimension_numbers<[1], [0], [0], [1], [0, 0, 1, 1], [], []>} : vector<16x16xf32>, vector<16x10xf32>, vector<16x10xf32> -> vector<16x10xf32>
    %c0_3 = arith.constant 0 : index
    %c0_4 = arith.constant 0 : index
    %8 = vector.load %arg3[%c0_3, %c0_4] : memref<16x10xf32, #tpu.memory_space<vmem>>, vector<16x10xf32>
    tpu.vector_store %arg3[%c0_3, %c0_4], %7 {strides = array<i32>} : memref<16x10xf32, #tpu.memory_space<vmem>>, vector<16x10xf32>,
    return
  }
  func.func @transform_0(%arg0: i32) -> (i32, i32) {
    %c0_i32 = arith.constant 0 : i32
    %c0_i32_0 = arith.constant 0 : i32
    return %arg0, %c0_i32 : i32, i32
  }
  func.func @transform_1(%arg0: i32) -> (i32, i32) {
    %c0_i32 = arith.constant 0 : i32
    %c0_i32_0 = arith.constant 0 : i32
    %c0_i32_1 = arith.constant 0 : i32
    return %c0_i32, %c0_i32_0 : i32, i32
  }
  func.func @transform_2(%arg0: i32) -> (i32, i32) {
    %c0_i32 = arith.constant 0 : i32
    %c0_i32_0 = arith.constant 0 : i32
    return %arg0, %c0_i32 : i32, i32
  }
}

</mosaic_0001>

<llo_original>
// kernel: tpu_custom_call.1
$region0: #{tpu_custom_call.1}
  #allocation0 [shape = 'u32[]', space=smem, size = 0x4, offset = 0x4, fixed_abs, tag = 'smem constant byte address 0x4 - core index']
  #allocation1 [shape = 'u32[144,128]{1,0:T(1,128)}', space=vmem, size = 0x12000, scoped, tag = 'internal scratch']
  %s0 = inlined_call_operand.vmem [shape: s32[16,1], index: 0, kind: input, shape index: {}]
  %s1 = inlined_call_operand.vmem [shape: f32[16,10], index: 1, kind: input, shape index: {}]
  %s2 = inlined_call_operand.hbm [shape: f32[16,10], index: 2, kind: output, shape index: {}]
  %s3 = sld [smem:[#allocation0]]
  $region18: #{tpu_custom_call.1} parent=0
    _
  %s5 = ssub.s32 1, %s3
  %s6 = scalar_select 0, %s5, %s3
  $region1: #{tpu_custom_call.1} parent=0
    #allocation2 [shape = 'u8[8192]{0}', space=vmem, size = 0x2000, scoped, tag = 'output window, operand 0, single buffered']
    #allocation3 [shape = 's32[1]{0}', space=sflag, size = 0x4, scoped, tag = 'scoped memory for tpu_custom_call.1']
    %7 = vsyncpa [#allocation3], 0
    // Predicated region
    $region2: #{tpu_custom_call.1} parent=1 // pred_check
      _
    $region3: #{tpu_custom_call.1} parent=1 // pred_check_branch
      %9 = sbr.rel (0) target = $region5
    $region4: #{tpu_custom_call.1} parent=1 // pred_region
      _
    $region5: #{tpu_custom_call.1} parent=1 // pred_fallthru
      _
    // Predicated region
    $region6: #{tpu_custom_call.1} parent=1 // pred_check
      _
    $region7: #{tpu_custom_call.1} parent=1 // pred_check_branch
      %11 = sbr.rel (0) target = $region9
    $region8: #{tpu_custom_call.1} parent=1 // pred_region
      _
    $region9: #{tpu_custom_call.1} parent=1 // pred_fallthru
      _
    %v12 = vlaneseq
    %v13 = vand.u32 %v12, 127
    %v14 = vld [vmem:[%s0] sm:$0xff]
    %v15 = vld [vmem:[%s0 + $0x8] sm:$0xff]
    %16 = vset.pattern.permute.xlu0 0
    %17 = vperm.xlu0 %16, %v14
    %v18 = vpop.permute.xlu0 %17
    %19 = vset.pattern.permute.xlu0 0
    %20 = vperm.xlu0 %19, %v15
    %v21 = vpop.permute.xlu0 %20
    %vm22 = vcmp.eq.s32.totalorder %v18, %v13
    %vm23 = vcmp.eq.s32.totalorder %v21, %v13
    %v24 = vsel %vm22, 1, 0
    %v25 = vsel %vm23, 1, 0
    %v26 = vcvt.s32.f32 %v24
    %v27 = vcvt.s32.f32 %v25
    %v28 = vld [vmem:[%s1] sm:$0xff]
    %v29 = vld [vmem:[%s1 + $0x8] sm:$0xff]
    %vm30 = vcmask 130048
    %v32 = vsel %vm30, %v26, 0
    %v35 = vsel %vm30, %v27, 0
    %37 = vmatprep.subr.mxu0 0.0
    %38 = vmatpush1.msra.mxu0 %v28
    %39 = vmatprep.subr.mxu0 0.0
    %40 = vmatpush1.msra.mxu0 %v29
    %41 = vmatprep.subr.mxu0 0.0
    %42 = vmatpush1.msra.mxu0 0.0
    %43 = vmatprep.subr.mxu0 0.0
    %44 = vmatpush1.msra.mxu0 0.0
    %45 = vmatprep.subr.mxu0 0.0
    %46 = vmatpush1.msra.mxu0 0.0
    %47 = vmatprep.subr.mxu0 0.0
    %48 = vmatpush1.msra.mxu0 0.0
    %49 = vmatprep.subr.mxu0 0.0
    %50 = vmatpush1.msra.mxu0 0.0
    %51 = vmatprep.subr.mxu0 0.0
    %52 = vmatpush1.msra.mxu0 0.0
    %53 = vmatprep.subr.mxu0 0.0
    %54 = vmatpush1.msra.mxu0 0.0
    %55 = vmatprep.subr.mxu0 0.0
    %56 = vmatpush1.msra.mxu0 0.0
    %57 = vmatprep.subr.mxu0 0.0
    %58 = vmatpush1.msra.mxu0 0.0
    %59 = vmatprep.subr.mxu0 0.0
    %60 = vmatpush1.msra.mxu0 0.0
    %61 = vmatprep.subr.mxu0 0.0
    %62 = vmatpush1.msra.mxu0 0.0
    %63 = vmatprep.subr.mxu0 0.0
    %64 = vmatpush1.msra.mxu0 0.0
    %65 = vmatprep.subr.mxu0 0.0
    %66 = vmatpush1.msra.mxu0 0.0
    %67 = vmatprep.subr.mxu0 0.0
    %68 = vmatpush1.msra.mxu0 0.0
    %69 = vmatprep.subr.mxu0 0.0
    %70 = vmatpush1.msra.mxu0 0.0
    %71 = vmatprep.subr.mxu0 0.0
    %72 = vmatpush1.msra.mxu0 0.0
    %73 = vmatprep.subr.mxu0 0.0
    %74 = vmatpush1.msra.mxu0 0.0
    %75 = vmatprep.subr.mxu0 0.0
    %76 = vmatpush1.msra.mxu0 0.0
    %77 = vmatprep.subr.mxu0 0.0
    %78 = vmatpush1.msra.mxu0 0.0
    %79 = vmatprep.subr.mxu0 0.0
    %80 = vmatpush1.msra.mxu0 0.0
    %81 = vmatprep.subr.mxu0 0.0
    %82 = vmatpush1.msra.mxu0 0.0
    %83 = vmatprep.subr.mxu0 0.0
    %84 = vmatpush1.msra.mxu0 0.0
    %85 = vmatprep.subr.mxu0 0.0
    %86 = vmatpush1.msra.mxu0 0.0
    %87 = vmatprep.subr.mxu0 0.0
    %88 = vmatpush1.msra.mxu0 0.0
    %89 = vmatprep.subr.mxu0 0.0
    %90 = vmatpush1.msra.mxu0 0.0
    %91 = vmatprep.subr.mxu0 0.0
    %92 = vmatpush1.msra.mxu0 0.0
    %93 = vmatprep.subr.mxu0 0.0
    %94 = vmatpush1.msra.mxu0 0.0
    %95 = vmatprep.subr.mxu0 0.0
    %96 = vmatpush1.msra.mxu0 0.0
    %97 = vmatprep.subr.mxu0 0.0
    %98 = vmatpush1.msra.mxu0 0.0
    %99 = vmatprep.subr.mxu0 0.0
    %100 = vmatpush1.msra.mxu0 0.0
    %101 = vmatprep.mubr.f32.mxu0 0.0
    %102 = vmatmul.mubr.f32.gmra.mrb[0].mxu0 %v32
    %v103 = vpop.f32.mrb[0].mxu0
    %v104 = vadd.f32 0.0, %v103
    %v105 = vpop.f32.mrb[0].mxu0
    %106 = vmatprep.mubr.f32.mxu0 0.0
    %107 = vmatmul.mubr.f32.gmra.mrb[0].mxu0 %v35
    %v108 = vpop.f32.mrb[0].mxu0
    %v109 = vadd.f32 0.0, %v108
    %v110 = vpop.f32.mrb[0].mxu0
    %111 = vdwg.mxu0
    %vm112 = vcmask 80896
    %113 = vst.msk [vmem:[#allocation2] sm:$0xff] %vm112, %v104
    %114 = vst.msk [vmem:[#allocation2 + $0x8] sm:$0xff] %vm112, %v109
    // Predicated region
    $region10: #{tpu_custom_call.1} parent=1 // pred_check
      _
    $region11: #{tpu_custom_call.1} parent=1 // pred_check_branch
      %116 = sbr.rel (0) target = $region13
    $region12: #{tpu_custom_call.1} parent=1 // pred_region
      %s118 = ssub.s32 256, 256
      %119 = vsyncadd [#allocation3], %s118
      %s120 = sshll.u32 [#allocation2], 4
      %s121 = int_to_ptr.vmem [resolvable:$true] %s120
      %126 = dma.vmem_to_hbm [thread:$0]  %s121, 256, %s2, [#allocation3], 128, 128, 8
    $region13: #{tpu_custom_call.1} parent=1 // pred_fallthru
      _
    // Predicated region
    $region14: #{tpu_custom_call.1} parent=1 // pred_check
      _
    $region15: #{tpu_custom_call.1} parent=1 // pred_check_branch
      %128 = sbr.rel (0) target = $region17
    $region16: #{tpu_custom_call.1} parent=1 // pred_region
      %129 = dma.done [#allocation3], 256
    $region17: #{tpu_custom_call.1} parent=1 // pred_fallthru
      _
    %130 = vsyncpa [#allocation3], 1

</llo_original>
